<compile_context>
chip_gen: v6e
topology: v6e:2x2x1
jax: 0.10.0
libtpu: 0.0.40
codegen_flags: <defaults>
</compile_context>

<pallas_src>
import jax
import jax.numpy as jnp
from jax.experimental import pallas as pl
from jax.experimental.pallas import tpu as pltpu

IN_F = 28 * 28   # 784
H1 = 128
H2 = 256
OUT_F = 10
OUT_PAD = 128    # lane-dense padded output width


def _round_up(x, m):
    return (x + m - 1) // m * m


def _mlp_kernel(x_ref, w1_ref, b1_ref, w2_ref, b2_ref, w3_ref, b3_ref, o_ref):
    # One batch tile: x (TB, 784), streamed in its HBM dtype; w1 matches it so
    # the dominant first matmul can use the bf16 MXU path when x is bf16.
    # h1/h2 stay f32 (f32 accumulation everywhere; compute is not the bottleneck).
    h1 = jnp.dot(x_ref[...], w1_ref[...],
                 preferred_element_type=jnp.float32) + b1_ref[...]
    h2 = jnp.dot(h1, w2_ref[...],
                 preferred_element_type=jnp.float32) + b2_ref[...]
    h3 = jnp.dot(h2, w3_ref[...],
                 preferred_element_type=jnp.float32) + b3_ref[...]
    o_ref[...] = h3.astype(o_ref.dtype)


def _fused_affine_kernel(x_ref, wf_ref, bf_ref, o_ref):
    # Single folded affine map: (TB,784) @ (784,128) + bias.
    o_ref[...] = (jnp.dot(x_ref[...], wf_ref[...],
                          preferred_element_type=jnp.float32)
                  + bf_ref[...]).astype(o_ref.dtype)


def fully_connected(x, w1, b1, w2, b2, w3, b3, *, tb=1024,
                    fuse_affine=False, return_padded=False):
    """Forward of Linear(784->128) -> Linear(128->256) -> Linear(256->10).

    x: (B, 784).  Pass x already stored as bf16 to halve the dominant HBM
    stream (the kernel is bandwidth-bound); accumulation is always f32.
    Weights are (in, out), biases (out,).
    """
    B = x.shape[0]
    assert x.shape[1] == IN_F

    # Batch tile: multiple of 8 (sublane), capped at tb, and — when the batch
    # allows — small enough that the grid has >= 2 steps so both v7x
    # TensorCores split the batch via the "parallel" grid axis.
    n_rows = _round_up(B, 8)
    tb_eff = min(tb, n_rows)
    if n_rows >= 16:
        tb_eff = min(tb_eff, _round_up(pl.cdiv(n_rows, 2), 8))
    grid = (pl.cdiv(B, tb_eff),)

    # Only raise the scoped-VMEM limit when the tile actually needs it
    # (v5e's default scoped VMEM is ~16 MiB).
    vmem_limit = (28 * 1024 * 1024) if tb_eff >= 512 else None
    compiler_params = pltpu.CompilerParams(
        dimension_semantics=("parallel",),
        vmem_limit_bytes=vmem_limit,
    )

    # Pad the 10-wide output layer to a full 128-lane slab (unmasked vst).
    w3p = jnp.pad(w3.astype(jnp.float32), ((0, 0), (0, OUT_PAD - OUT_F)))
    b3p = jnp.pad(b3.astype(jnp.float32), (0, OUT_PAD - OUT_F))

    const = lambda i: (0, 0)
    x_spec = pl.BlockSpec((tb_eff, IN_F), lambda i: (i, 0))   # batch-tiled
    out_specs = pl.BlockSpec((tb_eff, OUT_PAD), lambda i: (i, 0))
    out_shape = jax.ShapeDtypeStruct((B, OUT_PAD), jnp.float32)
    x_bytes = B * IN_F * x.dtype.itemsize
    out_bytes = B * OUT_PAD * 4

    if fuse_affine:
        # No activations => the whole MLP is one affine map.  Fold the (tiny)
        # weights on the wrapper side; the kernel does a single matmul.
        wf = ((w1.astype(jnp.float32) @ w2.astype(jnp.float32)) @ w3p)
        bf = ((b1.astype(jnp.float32) @ w2.astype(jnp.float32)
               + b2.astype(jnp.float32)) @ w3p + b3p).reshape(1, OUT_PAD)
        wf = wf.astype(x.dtype)  # match x for the MXU operand path
        cost = pl.CostEstimate(
            flops=2 * B * IN_F * OUT_PAD,
            transcendentals=0,
            bytes_accessed=x_bytes + wf.size * wf.dtype.itemsize
            + OUT_PAD * 4 + out_bytes)
        out = pl.pallas_call(
            _fused_affine_kernel,
            out_shape=out_shape,
            grid=grid,
            in_specs=[x_spec,
                      pl.BlockSpec((IN_F, OUT_PAD), const),   # VMEM-resident
                      pl.BlockSpec((1, OUT_PAD), const)],
            out_specs=out_specs,
            compiler_params=compiler_params,
            cost_estimate=cost,
        )(x, wf, bf)
    else:
        # Layer-by-layer path (bit-compatible rounding order with the module).
        w1c = w1.astype(x.dtype)               # dominant matmul in x's dtype
        w2c = w2.astype(jnp.float32)
        b1c = b1.reshape(1, H1).astype(jnp.float32)
        b2c = b2.reshape(1, H2).astype(jnp.float32)
        b3c = b3p.reshape(1, OUT_PAD)
        w_bytes = (w1c.size * w1c.dtype.itemsize
                   + (H1 * H2 + H2 * OUT_PAD + H1 + H2 + OUT_PAD) * 4)
        cost = pl.CostEstimate(
            flops=2 * B * (IN_F * H1 + H1 * H2 + H2 * OUT_PAD),
            transcendentals=0,
            bytes_accessed=x_bytes + w_bytes + out_bytes)
        out = pl.pallas_call(
            _mlp_kernel,
            out_shape=out_shape,
            grid=grid,
            in_specs=[x_spec,
                      pl.BlockSpec((IN_F, H1), const),        # weights/biases:
                      pl.BlockSpec((1, H1), const),           # constant index
                      pl.BlockSpec((H1, H2), const),          # maps -> DMA'd
                      pl.BlockSpec((1, H2), const),           # once, VMEM-
                      pl.BlockSpec((H2, OUT_PAD), const),     # resident
                      pl.BlockSpec((1, OUT_PAD), const)],
            out_specs=out_specs,
            compiler_params=compiler_params,
            cost_estimate=cost,
        )(x, w1c, b1c, w2c, b2c, w3p, b3c)

    if return_padded:
        return out              # (B, 128); caller slices [:, :10] under jit
    return out[:, :OUT_F]       # module semantics: (B, 10)


def _init_linear(key, in_f, out_f):
    # Deterministic synthetic init (uniform, PyTorch-like scale 1/sqrt(in_f)).
    kw, kb = jax.random.split(key)
    bound = 1.0 / (in_f ** 0.5)
    w = jax.random.uniform(kw, (in_f, out_f), jnp.float32, -bound, bound)
    b = jax.random.uniform(kb, (out_f,), jnp.float32, -bound, bound)
    return w, b


if __name__ == "__main__":
    key = jax.random.PRNGKey(0)
    kx, k1, k2, k3 = jax.random.split(key, 4)

    B = 8
    x = jax.random.normal(kx, (B, IN_F), jnp.float32)
    w1, b1 = _init_linear(k1, IN_F, H1)
    w2, b2 = _init_linear(k2, H1, H2)
    w3, b3 = _init_linear(k3, H2, OUT_F)

    # Pure-JAX reference (same math as the PyTorch module).
    ref = ((x @ w1 + b1) @ w2 + b2) @ w3 + b3

    # 1) f32 layer-by-layer path (strict check).
    out_f32 = jax.block_until_ready(fully_connected(x, w1, b1, w2, b2, w3, b3))
    assert out_f32.shape == (B, OUT_F)
    assert jnp.allclose(out_f32, ref, atol=1e-4, rtol=1e-4)

    # 2) Ragged batch (non-multiple of the tile) -> exercises the masked
    #    partial last block and the >=2-step grid split.
    B2 = 24
    x2 = jax.random.normal(kx, (B2, IN_F), jnp.float32)
    ref2 = ((x2 @ w1 + b1) @ w2 + b2) @ w3 + b3
    out2 = jax.block_until_ready(fully_connected(x2, w1, b1, w2, b2, w3, b3))
    assert out2.shape == (B2, OUT_F)
    assert jnp.allclose(out2, ref2, atol=1e-4, rtol=1e-4)

    # 3) bf16-x fast path: x genuinely stored as bf16 (halved HBM stream).
    out_bf16 = jax.block_until_ready(
        fully_connected(x.astype(jnp.bfloat16), w1, b1, w2, b2, w3, b3))
    assert out_bf16.shape == (B, OUT_F)
    assert jnp.allclose(out_bf16, ref, atol=5e-2, rtol=5e-2)

    # 4) Fused single-affine path (different rounding order, looser tolerance).
    out_fused = jax.block_until_ready(
        fully_connected(x, w1, b1, w2, b2, w3, b3, fuse_affine=True))
    assert out_fused.shape == (B, OUT_F)
    assert jnp.allclose(out_fused, ref, atol=5e-2, rtol=5e-2)

    print("KERNEL_OK")
</pallas_src>

<mosaic_0001>
module attributes {stable_mosaic.version = 11 : i64} {
  func.func @_mlp_kernel(%arg0: i32, %arg1: memref<8x784xf32, #tpu.memory_space<vmem>>, %arg2: memref<784x128xf32, #tpu.memory_space<vmem>>, %arg3: memref<1x128xf32, #tpu.memory_space<vmem>>, %arg4: memref<128x256xf32, #tpu.memory_space<vmem>>, %arg5: memref<1x256xf32, #tpu.memory_space<vmem>>, %arg6: memref<256x128xf32, #tpu.memory_space<vmem>>, %arg7: memref<1x128xf32, #tpu.memory_space<vmem>>, %arg8: memref<8x128xf32, #tpu.memory_space<vmem>>) attributes {dimension_semantics = [#tpu.dimension_semantics<parallel>], iteration_bounds = array<i64: 1>, scalar_prefetch = 0 : i64, scratch_operands = 0 : i64, tpu.core_type = #tpu.core_type<tc>, window_params = [{transform_indices = @transform_0, window_bounds = array<i64: 8, 784>}, {pipeline_mode = #tpu.pipeline_mode<synchronous>, transform_indices = @transform_1, window_bounds = array<i64: 784, 128>}, {pipeline_mode = #tpu.pipeline_mode<synchronous>, transform_indices = @transform_2, window_bounds = array<i64: 1, 128>}, {pipeline_mode = #tpu.pipeline_mode<synchronous>, transform_indices = @transform_3, window_bounds = array<i64: 128, 256>}, {pipeline_mode = #tpu.pipeline_mode<synchronous>, transform_indices = @transform_4, window_bounds = array<i64: 1, 256>}, {pipeline_mode = #tpu.pipeline_mode<synchronous>, transform_indices = @transform_5, window_bounds = array<i64: 256, 128>}, {pipeline_mode = #tpu.pipeline_mode<synchronous>, transform_indices = @transform_6, window_bounds = array<i64: 1, 128>}, {transform_indices = @transform_7, window_bounds = array<i64: 8, 128>}]} {
    %c0 = arith.constant 0 : index
    %c0_0 = arith.constant 0 : index
    %0 = vector.load %arg1[%c0, %c0_0] : memref<8x784xf32, #tpu.memory_space<vmem>>, vector<8x784xf32>
    %c0_1 = arith.constant 0 : index
    %c0_2 = arith.constant 0 : index
    %1 = vector.load %arg2[%c0_1, %c0_2] : memref<784x128xf32, #tpu.memory_space<vmem>>, vector<784x128xf32>
    %cst = arith.constant dense<0.000000e+00> : vector<8x128xf32>
    %2 = tpu.matmul %0, %1, %cst {dimension_numbers = #tpu.dot_dimension_numbers<[1], [0], [0], [1], [0, 0, 1, 1], [], []>} : vector<8x784xf32>, vector<784x128xf32>, vector<8x128xf32> -> vector<8x128xf32>
    %c0_3 = arith.constant 0 : index
    %c0_4 = arith.constant 0 : index
    %3 = vector.load %arg3[%c0_3, %c0_4] : memref<1x128xf32, #tpu.memory_space<vmem>>, vector<1x128xf32>
    %4 = vector.broadcast %3 : vector<1x128xf32> to vector<8x128xf32>
    %5 = arith.addf %2, %4 : vector<8x128xf32>
    %c0_5 = arith.constant 0 : index
    %c0_6 = arith.constant 0 : index
    %6 = vector.load %arg4[%c0_5, %c0_6] : memref<128x256xf32, #tpu.memory_space<vmem>>, vector<128x256xf32>
    %cst_7 = arith.constant dense<0.000000e+00> : vector<8x256xf32>
    %7 = tpu.matmul %5, %6, %cst_7 {dimension_numbers = #tpu.dot_dimension_numbers<[1], [0], [0], [1], [0, 0, 1, 1], [], []>} : vector<8x128xf32>, vector<128x256xf32>, vector<8x256xf32> -> vector<8x256xf32>
    %c0_8 = arith.constant 0 : index
    %c0_9 = arith.constant 0 : index
    %8 = vector.load %arg5[%c0_8, %c0_9] : memref<1x256xf32, #tpu.memory_space<vmem>>, vector<1x256xf32>
    %9 = vector.broadcast %8 : vector<1x256xf32> to vector<8x256xf32>
    %10 = arith.addf %7, %9 : vector<8x256xf32>
    %c0_10 = arith.constant 0 : index
    %c0_11 = arith.constant 0 : index
    %11 = vector.load %arg6[%c0_10, %c0_11] : memref<256x128xf32, #tpu.memory_space<vmem>>, vector<256x128xf32>
    %cst_12 = arith.constant dense<0.000000e+00> : vector<8x128xf32>
    %12 = tpu.matmul %10, %11, %cst_12 {dimension_numbers = #tpu.dot_dimension_numbers<[1], [0], [0], [1], [0, 0, 1, 1], [], []>} : vector<8x256xf32>, vector<256x128xf32>, vector<8x128xf32> -> vector<8x128xf32>
    %c0_13 = arith.constant 0 : index
    %c0_14 = arith.constant 0 : index
    %13 = vector.load %arg7[%c0_13, %c0_14] : memref<1x128xf32, #tpu.memory_space<vmem>>, vector<1x128xf32>
    %14 = vector.broadcast %13 : vector<1x128xf32> to vector<8x128xf32>
    %15 = arith.addf %12, %14 : vector<8x128xf32>
    %c0_15 = arith.constant 0 : index
    %c0_16 = arith.constant 0 : index
    %16 = vector.load %arg8[%c0_15, %c0_16] : memref<8x128xf32, #tpu.memory_space<vmem>>, vector<8x128xf32>
    tpu.vector_store %arg8[%c0_15, %c0_16], %15 {strides = array<i32>} : memref<8x128xf32, #tpu.memory_space<vmem>>, vector<8x128xf32>,
    return
  }
  func.func @transform_0(%arg0: i32) -> (i32, i32) {
    %c0_i32 = arith.constant 0 : i32
    %c0_i32_0 = arith.constant 0 : i32
    return %arg0, %c0_i32 : i32, i32
  }
  func.func @transform_1(%arg0: i32) -> (i32, i32) {
    %c0_i32 = arith.constant 0 : i32
    %c0_i32_0 = arith.constant 0 : i32
    %c0_i32_1 = arith.constant 0 : i32
    return %c0_i32, %c0_i32_0 : i32, i32
  }
  func.func @transform_2(%arg0: i32) -> (i32, i32) {
    %c0_i32 = arith.constant 0 : i32
    %c0_i32_0 = arith.constant 0 : i32
    %c0_i32_1 = arith.constant 0 : i32
    return %c0_i32, %c0_i32_0 : i32, i32
  }
  func.func @transform_3(%arg0: i32) -> (i32, i32) {
    %c0_i32 = arith.constant 0 : i32
    %c0_i32_0 = arith.constant 0 : i32
    %c0_i32_1 = arith.constant 0 : i32
    return %c0_i32, %c0_i32_0 : i32, i32
  }
  func.func @transform_4(%arg0: i32) -> (i32, i32) {
    %c0_i32 = arith.constant 0 : i32
    %c0_i32_0 = arith.constant 0 : i32
    %c0_i32_1 = arith.constant 0 : i32
    return %c0_i32, %c0_i32_0 : i32, i32
  }
  func.func @transform_5(%arg0: i32) -> (i32, i32) {
    %c0_i32 = arith.constant 0 : i32
    %c0_i32_0 = arith.constant 0 : i32
    %c0_i32_1 = arith.constant 0 : i32
    return %c0_i32, %c0_i32_0 : i32, i32
  }
  func.func @transform_6(%arg0: i32) -> (i32, i32) {
    %c0_i32 = arith.constant 0 : i32
    %c0_i32_0 = arith.constant 0 : i32
    %c0_i32_1 = arith.constant 0 : i32
    return %c0_i32, %c0_i32_0 : i32, i32
  }
  func.func @transform_7(%arg0: i32) -> (i32, i32) {
    %c0_i32 = arith.constant 0 : i32
    %c0_i32_0 = arith.constant 0 : i32
    return %arg0, %c0_i32 : i32, i32
  }
}

</mosaic_0001>

<llo_original>
// kernel: tpu_custom_call.1
$region0: #{tpu_custom_call.1}
  #allocation0 [shape = 'u32[]', space=smem, size = 0x4, offset = 0x4, fixed_abs, tag = 'smem constant byte address 0x4 - core index']
  #allocation1 [shape = 'u32[144,128]{1,0:T(1,128)}', space=vmem, size = 0x12000, scoped, tag = 'internal scratch']
  %s0 = inlined_call_operand.hbm [shape: f32[8,784], index: 0, kind: input, shape index: {}]
  %s1 = inlined_call_operand.hbm [shape: f32[784,128], index: 1, kind: input, shape index: {}]
  %s2 = inlined_call_operand.vmem [shape: f32[1,128], index: 2, kind: input, shape index: {}]
  %s3 = inlined_call_operand.hbm [shape: f32[128,256], index: 3, kind: input, shape index: {}]
  %s4 = inlined_call_operand.vmem [shape: f32[1,256], index: 4, kind: input, shape index: {}]
  %s5 = inlined_call_operand.hbm [shape: f32[256,128], index: 5, kind: input, shape index: {}]
  %s6 = inlined_call_operand.vmem [shape: f32[1,128], index: 6, kind: input, shape index: {}]
  %s7 = inlined_call_operand.hbm [shape: f32[8,128], index: 7, kind: output, shape index: {}]
  %s8 = sld [smem:[#allocation0]]
  $region54: #{tpu_custom_call.1} parent=0
    _
  %s10 = ssub.s32 1, %s8
  %s11 = scalar_select 0, %s10, %s8
  $region1: #{tpu_custom_call.1} parent=0
    #allocation2 [shape = 'u8[28672]{0}', space=vmem, size = 0x7000, scoped, tag = 'input window, operand 0, single buffered']
    #allocation3 [shape = 's32[1]{0}', space=sflag, size = 0x4, scoped, tag = 'scoped memory for tpu_custom_call.1']
    #allocation4 [shape = 's32[1]{0}', space=sflag, size = 0x4, scoped, tag = 'scoped memory for tpu_custom_call.1']
    #allocation5 [shape = 'u8[401408]{0}', space=vmem, size = 0x62000, scoped, tag = 'input window, operand 1, single buffered']
    #allocation6 [shape = 's32[1]{0}', space=sflag, size = 0x4, scoped, tag = 'scoped memory for tpu_custom_call.1']
    #allocation7 [shape = 'u8[131072]{0}', space=vmem, size = 0x20000, scoped, tag = 'input window, operand 3, single buffered']
    #allocation8 [shape = 'u8[131072]{0}', space=vmem, size = 0x20000, scoped, tag = 'input window, operand 5, single buffered']
    #allocation9 [shape = 's32[1]{0}', space=sflag, size = 0x4, scoped, tag = 'scoped memory for tpu_custom_call.1']
    #allocation10 [shape = 'u8[4096]{0}', space=vmem, size = 0x1000, scoped, tag = 'output window, operand 0, single buffered']
    %12 = vsyncpa [#allocation3], 0
    %13 = vsyncpa [#allocation6], 0
    %14 = vsyncpa [#allocation9], 0
    %15 = vsyncpa [#allocation4], 0
    // Predicated region
    $region2: #{tpu_custom_call.1} parent=1 // pred_check
      _
    $region3: #{tpu_custom_call.1} parent=1 // pred_check_branch
      %17 = sbr.rel (0) target = $region5
    $region4: #{tpu_custom_call.1} parent=1 // pred_region
      %s19 = ssub.s32 896, 896
      %20 = vsyncadd [#allocation3], %s19
      %s22 = sshll.u32 [#allocation2], 4
      %s23 = int_to_ptr.vmem [resolvable:$true] %s22
      %25 = dma.hbm_to_vmem [thread:$0]  %s0, 896, %s23, [#allocation3]
    $region5: #{tpu_custom_call.1} parent=1 // pred_fallthru
      _
    // Predicated region
    $region6: #{tpu_custom_call.1} parent=1 // pred_check
      _
    $region7: #{tpu_custom_call.1} parent=1 // pred_check_branch
      %27 = sbr.rel (0) target = $region9
    $region8: #{tpu_custom_call.1} parent=1 // pred_region
      %s29 = ssub.s32 12544, 12544
      %30 = vsyncadd [#allocation6], %s29
      %s31 = sshll.u32 [#allocation5], 4
      %s32 = int_to_ptr.vmem [resolvable:$true] %s31
      %37 = dma.hbm_to_vmem [thread:$0]  %s1, 12544, %s32, [#allocation6], 128, 128, 8
    $region9: #{tpu_custom_call.1} parent=1 // pred_fallthru
      _
    // Predicated region
    $region10: #{tpu_custom_call.1} parent=1 // pred_check
      _
    $region11: #{tpu_custom_call.1} parent=1 // pred_check_branch
      %39 = sbr.rel (0) target = $region13
    $region12: #{tpu_custom_call.1} parent=1 // pred_region
      _
    $region13: #{tpu_custom_call.1} parent=1 // pred_fallthru
      _
    // Predicated region
    $region14: #{tpu_custom_call.1} parent=1 // pred_check
      _
    $region15: #{tpu_custom_call.1} parent=1 // pred_check_branch
      %41 = sbr.rel (0) target = $region17
    $region16: #{tpu_custom_call.1} parent=1 // pred_region
      %s43 = ssub.s32 4096, 4096
      %44 = vsyncadd [#allocation6], %s43
      %s45 = sshll.u32 [#allocation7], 4
      %s46 = int_to_ptr.vmem [resolvable:$true] %s45
      %51 = dma.hbm_to_vmem [thread:$0]  %s3, 4096, %s46, [#allocation6], 256, 256, 16
    $region17: #{tpu_custom_call.1} parent=1 // pred_fallthru
      _
    // Predicated region
    $region18: #{tpu_custom_call.1} parent=1 // pred_check
      _
    $region19: #{tpu_custom_call.1} parent=1 // pred_check_branch
      %53 = sbr.rel (0) target = $region21
    $region20: #{tpu_custom_call.1} parent=1 // pred_region
      _
    $region21: #{tpu_custom_call.1} parent=1 // pred_fallthru
      _
    // Predicated region
    $region22: #{tpu_custom_call.1} parent=1 // pred_check
      _
    $region23: #{tpu_custom_call.1} parent=1 // pred_check_branch
      %55 = sbr.rel (0) target = $region25
    $region24: #{tpu_custom_call.1} parent=1 // pred_region
      %s57 = ssub.s32 4096, 4096
      %58 = vsyncadd [#allocation9], %s57
      %s59 = sshll.u32 [#allocation8], 4
      %s60 = int_to_ptr.vmem [resolvable:$true] %s59
      %65 = dma.hbm_to_vmem [thread:$0]  %s5, 4096, %s60, [#allocation9], 128, 128, 8
    $region25: #{tpu_custom_call.1} parent=1 // pred_fallthru
      _
    // Predicated region
    $region26: #{tpu_custom_call.1} parent=1 // pred_check
      _
    $region27: #{tpu_custom_call.1} parent=1 // pred_check_branch
      %67 = sbr.rel (0) target = $region29
    $region28: #{tpu_custom_call.1} parent=1 // pred_region
      _
    $region29: #{tpu_custom_call.1} parent=1 // pred_fallthru
      _
    // Predicated region
    $region30: #{tpu_custom_call.1} parent=1 // pred_check
      _
    $region31: #{tpu_custom_call.1} parent=1 // pred_check_branch
      %69 = sbr.rel (0) target = $region33
    $region32: #{tpu_custom_call.1} parent=1 // pred_region
      %70 = dma.done [#allocation3], 896
    $region33: #{tpu_custom_call.1} parent=1 // pred_fallthru
      _
    // Predicated region
    $region34: #{tpu_custom_call.1} parent=1 // pred_check
      _
    $region35: #{tpu_custom_call.1} parent=1 // pred_check_branch
      %72 = sbr.rel (0) target = $region37
    $region36: #{tpu_custom_call.1} parent=1 // pred_region
      %73 = dma.done [#allocation6], 12544
    $region37: #{tpu_custom_call.1} parent=1 // pred_fallthru
      _
    // Predicated region
    $region38: #{tpu_custom_call.1} parent=1 // pred_check
      _
    $region39: #{tpu_custom_call.1} parent=1 // pred_check_branch
      %75 = sbr.rel (0) target = $region41
    $region40: #{tpu_custom_call.1} parent=1 // pred_region
      %76 = dma.done [#allocation6], 4096
    $region41: #{tpu_custom_call.1} parent=1 // pred_fallthru
      _
    // Predicated region
    $region42: #{tpu_custom_call.1} parent=1 // pred_check
      _
    $region43: #{tpu_custom_call.1} parent=1 // pred_check_branch
      %78 = sbr.rel (0) target = $region45
    $region44: #{tpu_custom_call.1} parent=1 // pred_region
      %79 = dma.done [#allocation9], 4096
    $region45: #{tpu_custom_call.1} parent=1 // pred_fallthru
      _
    %v80 = vld [vmem:[#allocation2] sm:$0xff]
    %v81 = vld [vmem:[#allocation2 + $0x8] sm:$0xff]
    %v82 = vld [vmem:[#allocation2 + $0x10] sm:$0xff]
    %v83 = vld [vmem:[#allocation2 + $0x18] sm:$0xff]
    %v84 = vld [vmem:[#allocation2 + $0x20] sm:$0xff]
    %v85 = vld [vmem:[#allocation2 + $0x28] sm:$0xff]
    %v86 = vld [vmem:[#allocation2 + $0x30] sm:$0xff]
    %v87 = vld [vmem:[#allocation5] sm:$0xff]
    %v88 = vld [vmem:[#allocation5 + $0x8] sm:$0xff]
    %v89 = vld [vmem:[#allocation5 + $0x10] sm:$0xff]
    %v90 = vld [vmem:[#allocation5 + $0x18] sm:$0xff]
    %v91 = vld [vmem:[#allocation5 + $0x20] sm:$0xff]
    %v92 = vld [vmem:[#allocation5 + $0x28] sm:$0xff]
    %v93 = vld [vmem:[#allocation5 + $0x30] sm:$0xff]
    %v94 = vld [vmem:[#allocation5 + $0x38] sm:$0xff]
    %v95 = vld [vmem:[#allocation5 + $0x40] sm:$0xff]
    %v96 = vld [vmem:[#allocation5 + $0x48] sm:$0xff]
    %v97 = vld [vmem:[#allocation5 + $0x50] sm:$0xff]
    %v98 = vld [vmem:[#allocation5 + $0x58] sm:$0xff]
    %v99 = vld [vmem:[#allocation5 + $0x60] sm:$0xff]
    %v100 = vld [vmem:[#allocation5 + $0x68] sm:$0xff]
    %v101 = vld [vmem:[#allocation5 + $0x70] sm:$0xff]
    %v102 = vld [vmem:[#allocation5 + $0x78] sm:$0xff]
    %v103 = vld [vmem:[#allocation5 + $0x80] sm:$0xff]
    %v104 = vld [vmem:[#allocation5 + $0x88] sm:$0xff]
    %v105 = vld [vmem:[#allocation5 + $0x90] sm:$0xff]
    %v106 = vld [vmem:[#allocation5 + $0x98] sm:$0xff]
    %v107 = vld [vmem:[#allocation5 + $0xa0] sm:$0xff]
    %v108 = vld [vmem:[#allocation5 + $0xa8] sm:$0xff]
    %v109 = vld [vmem:[#allocation5 + $0xb0] sm:$0xff]
    %v110 = vld [vmem:[#allocation5 + $0xb8] sm:$0xff]
    %v111 = vld [vmem:[#allocation5 + $0xc0] sm:$0xff]
    %v112 = vld [vmem:[#allocation5 + $0xc8] sm:$0xff]
    %v113 = vld [vmem:[#allocation5 + $0xd0] sm:$0xff]
    %v114 = vld [vmem:[#allocation5 + $0xd8] sm:$0xff]
    %v115 = vld [vmem:[#allocation5 + $0xe0] sm:$0xff]
    %v116 = vld [vmem:[#allocation5 + $0xe8] sm:$0xff]
    %v117 = vld [vmem:[#allocation5 + $0xf0] sm:$0xff]
    %v118 = vld [vmem:[#allocation5 + $0xf8] sm:$0xff]
    %v119 = vld [vmem:[#allocation5 + $0x100] sm:$0xff]
    %v120 = vld [vmem:[#allocation5 + $0x108] sm:$0xff]
    %v121 = vld [vmem:[#allocation5 + $0x110] sm:$0xff]
    %v122 = vld [vmem:[#allocation5 + $0x118] sm:$0xff]
    %v123 = vld [vmem:[#allocation5 + $0x120] sm:$0xff]
    %v124 = vld [vmem:[#allocation5 + $0x128] sm:$0xff]
    %v125 = vld [vmem:[#allocation5 + $0x130] sm:$0xff]
    %v126 = vld [vmem:[#allocation5 + $0x138] sm:$0xff]
    %v127 = vld [vmem:[#allocation5 + $0x140] sm:$0xff]
    %v128 = vld [vmem:[#allocation5 + $0x148] sm:$0xff]
    %v129 = vld [vmem:[#allocation5 + $0x150] sm:$0xff]
    %v130 = vld [vmem:[#allocation5 + $0x158] sm:$0xff]
    %v131 = vld [vmem:[#allocation5 + $0x160] sm:$0xff]
    %v132 = vld [vmem:[#allocation5 + $0x168] sm:$0xff]
    %v133 = vld [vmem:[#allocation5 + $0x170] sm:$0xff]
    %v134 = vld [vmem:[#allocation5 + $0x178] sm:$0xff]
    %v135 = vld [vmem:[#allocation5 + $0x180] sm:$0xff]
    %v136 = vld [vmem:[#allocation5 + $0x188] sm:$0xff]
    %v137 = vld [vmem:[#allocation5 + $0x190] sm:$0xff]
    %v138 = vld [vmem:[#allocation5 + $0x198] sm:$0xff]
    %v139 = vld [vmem:[#allocation5 + $0x1a0] sm:$0xff]
    %v140 = vld [vmem:[#allocation5 + $0x1a8] sm:$0xff]
    %v141 = vld [vmem:[#allocation5 + $0x1b0] sm:$0xff]
    %v142 = vld [vmem:[#allocation5 + $0x1b8] sm:$0xff]
    %v143 = vld [vmem:[#allocation5 + $0x1c0] sm:$0xff]
    %v144 = vld [vmem:[#allocation5 + $0x1c8] sm:$0xff]
    %v145 = vld [vmem:[#allocation5 + $0x1d0] sm:$0xff]
    %v146 = vld [vmem:[#allocation5 + $0x1d8] sm:$0xff]
    %v147 = vld [vmem:[#allocation5 + $0x1e0] sm:$0xff]
    %v148 = vld [vmem:[#allocation5 + $0x1e8] sm:$0xff]
    %v149 = vld [vmem:[#allocation5 + $0x1f0] sm:$0xff]
    %v150 = vld [vmem:[#allocation5 + $0x1f8] sm:$0xff]
    %v151 = vld [vmem:[#allocation5 + $0x200] sm:$0xff]
    %v152 = vld [vmem:[#allocation5 + $0x208] sm:$0xff]
    %v153 = vld [vmem:[#allocation5 + $0x210] sm:$0xff]
    %v154 = vld [vmem:[#allocation5 + $0x218] sm:$0xff]
    %v155 = vld [vmem:[#allocation5 + $0x220] sm:$0xff]
    %v156 = vld [vmem:[#allocation5 + $0x228] sm:$0xff]
    %v157 = vld [vmem:[#allocation5 + $0x230] sm:$0xff]
    %v158 = vld [vmem:[#allocation5 + $0x238] sm:$0xff]
    %v159 = vld [vmem:[#allocation5 + $0x240] sm:$0xff]
    %v160 = vld [vmem:[#allocation5 + $0x248] sm:$0xff]
    %v161 = vld [vmem:[#allocation5 + $0x250] sm:$0xff]
    %v162 = vld [vmem:[#allocation5 + $0x258] sm:$0xff]
    %v163 = vld [vmem:[#allocation5 + $0x260] sm:$0xff]
    %v164 = vld [vmem:[#allocation5 + $0x268] sm:$0xff]
    %v165 = vld [vmem:[#allocation5 + $0x270] sm:$0xff]
    %v166 = vld [vmem:[#allocation5 + $0x278] sm:$0xff]
    %v167 = vld [vmem:[#allocation5 + $0x280] sm:$0xff]
    %v168 = vld [vmem:[#allocation5 + $0x288] sm:$0xff]
    %v169 = vld [vmem:[#allocation5 + $0x290] sm:$0xff]
    %v170 = vld [vmem:[#allocation5 + $0x298] sm:$0xff]
    %v171 = vld [vmem:[#allocation5 + $0x2a0] sm:$0xff]
    %v172 = vld [vmem:[#allocation5 + $0x2a8] sm:$0xff]
    %v173 = vld [vmem:[#allocation5 + $0x2b0] sm:$0xff]
    %v174 = vld [vmem:[#allocation5 + $0x2b8] sm:$0xff]
    %v175 = vld [vmem:[#allocation5 + $0x2c0] sm:$0xff]
    %v176 = vld [vmem:[#allocation5 + $0x2c8] sm:$0xff]
    %v177 = vld [vmem:[#allocation5 + $0x2d0] sm:$0xff]
    %v178 = vld [vmem:[#allocation5 + $0x2d8] sm:$0xff]
    %v179 = vld [vmem:[#allocation5 + $0x2e0] sm:$0xff]
    %v180 = vld [vmem:[#allocation5 + $0x2e8] sm:$0xff]
    %v181 = vld [vmem:[#allocation5 + $0x2f0] sm:$0xff]
    %v182 = vld [vmem:[#allocation5 + $0x2f8] sm:$0xff]
    %v183 = vld [vmem:[#allocation5 + $0x300] sm:$0xff]
    %v184 = vld [vmem:[#allocation5 + $0x308] sm:$0xff]
    %v185 = vld [vmem:[%s2] sm:$0x1]
    %v187 = vlaneseq
    %v188 = vshrl.u32 %v187, 7
    %v189 = vsub.s32 0, %v188
    %v190 = vrot.slane %v185, %v189
    %vm192 = vcmask 130048
    %v194 = vsel %vm192, %v86, 0
    %196 = vmatprep.subr.mxu0 0.0
    %197 = vmatpush1.msra.mxu0 %v102
    %198 = vmatprep.subr.mxu0 0.0
    %199 = vmatpush1.msra.mxu0 %v101
    %200 = vmatprep.subr.mxu0 0.0
    %201 = vmatpush1.msra.mxu0 %v100
    %202 = vmatprep.subr.mxu0 0.0
    %203 = vmatpush1.msra.mxu0 %v99
    %204 = vmatprep.subr.mxu0 0.0
    %205 = vmatpush1.msra.mxu0 %v98
    %206 = vmatprep.subr.mxu0 0.0
    %207 = vmatpush1.msra.mxu0 %v97
    %208 = vmatprep.subr.mxu0 0.0
    %209 = vmatpush1.msra.mxu0 %v96
    %210 = vmatprep.subr.mxu0 0.0
    %211 = vmatpush1.msra.mxu0 %v95
    %212 = vmatprep.subr.mxu0 0.0
    %213 = vmatpush1.msra.mxu0 %v94
    %214 = vmatprep.subr.mxu0 0.0
    %215 = vmatpush1.msra.mxu0 %v93
    %216 = vmatprep.subr.mxu0 0.0
    %217 = vmatpush1.msra.mxu0 %v92
    %218 = vmatprep.subr.mxu0 0.0
    %219 = vmatpush1.msra.mxu0 %v91
    %220 = vmatprep.subr.mxu0 0.0
    %221 = vmatpush1.msra.mxu0 %v90
    %222 = vmatprep.subr.mxu0 0.0
    %223 = vmatpush1.msra.mxu0 %v89
    %224 = vmatprep.subr.mxu0 0.0
    %225 = vmatpush1.msra.mxu0 %v88
    %226 = vmatprep.subr.mxu0 0.0
    %227 = vmatpush1.msra.mxu0 %v87
    %228 = vmatprep.subr.mxu0 0.0
    %229 = vmatpush2.msra.mxu0 %v118
    %230 = vmatprep.subr.mxu0 0.0
    %231 = vmatpush2.msra.mxu0 %v117
    %232 = vmatprep.subr.mxu0 0.0
    %233 = vmatpush2.msra.mxu0 %v116
    %234 = vmatprep.subr.mxu0 0.0
    %235 = vmatpush2.msra.mxu0 %v115
    %236 = vmatprep.subr.mxu0 0.0
    %237 = vmatpush2.msra.mxu0 %v114
    %238 = vmatprep.subr.mxu0 0.0
    %239 = vmatpush2.msra.mxu0 %v113
    %240 = vmatprep.subr.mxu0 0.0
    %241 = vmatpush2.msra.mxu0 %v112
    %242 = vmatprep.subr.mxu0 0.0
    %243 = vmatpush2.msra.mxu0 %v111
    %244 = vmatprep.subr.mxu0 0.0
    %245 = vmatpush2.msra.mxu0 %v110
    %246 = vmatprep.subr.mxu0 0.0
    %247 = vmatpush2.msra.mxu0 %v109
    %248 = vmatprep.subr.mxu0 0.0
    %249 = vmatpush2.msra.mxu0 %v108
    %250 = vmatprep.subr.mxu0 0.0
    %251 = vmatpush2.msra.mxu0 %v107
    %252 = vmatprep.subr.mxu0 0.0
    %253 = vmatpush2.msra.mxu0 %v106
    %254 = vmatprep.subr.mxu0 0.0
    %255 = vmatpush2.msra.mxu0 %v105
    %256 = vmatprep.subr.mxu0 0.0
    %257 = vmatpush2.msra.mxu0 %v104
    %258 = vmatprep.subr.mxu0 0.0
    %259 = vmatpush2.msra.mxu0 %v103
    %260 = vmatprep.mubr.f32.mxu0 %v81
    %261 = vmatmul.mubr.f32.gmra.mxu0 %v80
    %v262 = vpop.f32.mrf.mxu0
    %v263 = vadd.f32 %v190, %v262
    %v264 = vpop.f32.mrf.mxu0
    %265 = vdwg.mxu0
    %266 = vmatprep.subr.mxu0 0.0
    %267 = vmatpush1.msra.mxu0 %v134
    %268 = vmatprep.subr.mxu0 0.0
    %269 = vmatpush1.msra.mxu0 %v133
    %270 = vmatprep.subr.mxu0 0.0
    %271 = vmatpush1.msra.mxu0 %v132
    %272 = vmatprep.subr.mxu0 0.0
    %273 = vmatpush1.msra.mxu0 %v131
    %274 = vmatprep.subr.mxu0 0.0
    %275 = vmatpush1.msra.mxu0 %v130
    %276 = vmatprep.subr.mxu0 0.0
    %277 = vmatpush1.msra.mxu0 %v129
    %278 = vmatprep.subr.mxu0 0.0
    %279 = vmatpush1.msra.mxu0 %v128
    %280 = vmatprep.subr.mxu0 0.0
    %281 = vmatpush1.msra.mxu0 %v127
    %282 = vmatprep.subr.mxu0 0.0
    %283 = vmatpush1.msra.mxu0 %v126
    %284 = vmatprep.subr.mxu0 0.0
    %285 = vmatpush1.msra.mxu0 %v125
    %286 = vmatprep.subr.mxu0 0.0
    %287 = vmatpush1.msra.mxu0 %v124
    %288 = vmatprep.subr.mxu0 0.0
    %289 = vmatpush1.msra.mxu0 %v123
    %290 = vmatprep.subr.mxu0 0.0
    %291 = vmatpush1.msra.mxu0 %v122
    %292 = vmatprep.subr.mxu0 0.0
    %293 = vmatpush1.msra.mxu0 %v121
    %294 = vmatprep.subr.mxu0 0.0
    %295 = vmatpush1.msra.mxu0 %v120
    %296 = vmatprep.subr.mxu0 0.0
    %297 = vmatpush1.msra.mxu0 %v119
    %298 = vmatprep.subr.mxu0 0.0
    %299 = vmatpush2.msra.mxu0 %v150
    %300 = vmatprep.subr.mxu0 0.0
    %301 = vmatpush2.msra.mxu0 %v149
    %302 = vmatprep.subr.mxu0 0.0
    %303 = vmatpush2.msra.mxu0 %v148
    %304 = vmatprep.subr.mxu0 0.0
    %305 = vmatpush2.msra.mxu0 %v147
    %306 = vmatprep.subr.mxu0 0.0
    %307 = vmatpush2.msra.mxu0 %v146
    %308 = vmatprep.subr.mxu0 0.0
    %309 = vmatpush2.msra.mxu0 %v145
    %310 = vmatprep.subr.mxu0 0.0
    %311 = vmatpush2.msra.mxu0 %v144
    %312 = vmatprep.subr.mxu0 0.0
    %313 = vmatpush2.msra.mxu0 %v143
    %314 = vmatprep.subr.mxu0 0.0
    %315 = vmatpush2.msra.mxu0 %v142
    %316 = vmatprep.subr.mxu0 0.0
    %317 = vmatpush2.msra.mxu0 %v141
    %318 = vmatprep.subr.mxu0 0.0
    %319 = vmatpush2.msra.mxu0 %v140
    %320 = vmatprep.subr.mxu0 0.0
    %321 = vmatpush2.msra.mxu0 %v139
    %322 = vmatprep.subr.mxu0 0.0
    %323 = vmatpush2.msra.mxu0 %v138
    %324 = vmatprep.subr.mxu0 0.0
    %325 = vmatpush2.msra.mxu0 %v137
    %326 = vmatprep.subr.mxu0 0.0
    %327 = vmatpush2.msra.mxu0 %v136
    %328 = vmatprep.subr.mxu0 0.0
    %329 = vmatpush2.msra.mxu0 %v135
    %330 = vmatprep.mubr.f32.mxu0 %v83
    %331 = vmatmul.mubr.f32.gmra.mxu0 %v82
    %v332 = vpop.f32.mrf.mxu0
    %v333 = vadd.f32 %v263, %v332
    %v334 = vpop.f32.mrf.mxu0
    %335 = vdwg.mxu0
    %336 = vmatprep.subr.mxu0 0.0
    %337 = vmatpush1.msra.mxu0 %v166
    %338 = vmatprep.subr.mxu0 0.0
    %339 = vmatpush1.msra.mxu0 %v165
    %340 = vmatprep.subr.mxu0 0.0
    %341 = vmatpush1.msra.mxu0 %v164
    %342 = vmatprep.subr.mxu0 0.0
    %343 = vmatpush1.msra.mxu0 %v163
    %344 = vmatprep.subr.mxu0 0.0
    %345 = vmatpush1.msra.mxu0 %v162
    %346 = vmatprep.subr.mxu0 0.0
    %347 = vmatpush1.msra.mxu0 %v161
    %348 = vmatprep.subr.mxu0 0.0
    %349 = vmatpush1.msra.mxu0 %v160
    %350 = vmatprep.subr.mxu0 0.0
    %351 = vmatpush1.msra.mxu0 %v159
    %352 = vmatprep.subr.mxu0 0.0
    %353 = vmatpush1.msra.mxu0 %v158
    %354 = vmatprep.subr.mxu0 0.0
    %355 = vmatpush1.msra.mxu0 %v157
    %356 = vmatprep.subr.mxu0 0.0
    %357 = vmatpush1.msra.mxu0 %v156
    %358 = vmatprep.subr.mxu0 0.0
    %359 = vmatpush1.msra.mxu0 %v155
    %360 = vmatprep.subr.mxu0 0.0
    %361 = vmatpush1.msra.mxu0 %v154
    %362 = vmatprep.subr.mxu0 0.0
    %363 = vmatpush1.msra.mxu0 %v153
    %364 = vmatprep.subr.mxu0 0.0
    %365 = vmatpush1.msra.mxu0 %v152
    %366 = vmatprep.subr.mxu0 0.0
    %367 = vmatpush1.msra.mxu0 %v151
    %368 = vmatprep.subr.mxu0 0.0
    %369 = vmatpush2.msra.mxu0 %v182
    %370 = vmatprep.subr.mxu0 0.0
    %371 = vmatpush2.msra.mxu0 %v181
    %372 = vmatprep.subr.mxu0 0.0
    %373 = vmatpush2.msra.mxu0 %v180
    %374 = vmatprep.subr.mxu0 0.0
    %375 = vmatpush2.msra.mxu0 %v179
    %376 = vmatprep.subr.mxu0 0.0
    %377 = vmatpush2.msra.mxu0 %v178
    %378 = vmatprep.subr.mxu0 0.0
    %379 = vmatpush2.msra.mxu0 %v177
    %380 = vmatprep.subr.mxu0 0.0
    %381 = vmatpush2.msra.mxu0 %v176
    %382 = vmatprep.subr.mxu0 0.0
    %383 = vmatpush2.msra.mxu0 %v175
    %384 = vmatprep.subr.mxu0 0.0
    %385 = vmatpush2.msra.mxu0 %v174
    %386 = vmatprep.subr.mxu0 0.0
    %387 = vmatpush2.msra.mxu0 %v173
    %388 = vmatprep.subr.mxu0 0.0
    %389 = vmatpush2.msra.mxu0 %v172
    %390 = vmatprep.subr.mxu0 0.0
    %391 = vmatpush2.msra.mxu0 %v171
    %392 = vmatprep.subr.mxu0 0.0
    %393 = vmatpush2.msra.mxu0 %v170
    %394 = vmatprep.subr.mxu0 0.0
    %395 = vmatpush2.msra.mxu0 %v169
    %396 = vmatprep.subr.mxu0 0.0
    %397 = vmatpush2.msra.mxu0 %v168
    %398 = vmatprep.subr.mxu0 0.0
    %399 = vmatpush2.msra.mxu0 %v167
    %400 = vmatprep.mubr.f32.mxu0 %v85
    %401 = vmatmul.mubr.f32.gmra.mxu0 %v84
    %v402 = vpop.f32.mrf.mxu0
    %v403 = vadd.f32 %v333, %v402
    %v404 = vpop.f32.mrf.mxu0
    %405 = vdwg.mxu0
    %406 = vmatprep.subr.mxu0 0.0
    %407 = vmatpush1.msra.mxu0 0.0
    %408 = vmatprep.subr.mxu0 0.0
    %409 = vmatpush1.msra.mxu0 0.0
    %410 = vmatprep.subr.mxu0 0.0
    %411 = vmatpush1.msra.mxu0 0.0
    %412 = vmatprep.subr.mxu0 0.0
    %413 = vmatpush1.msra.mxu0 0.0
    %414 = vmatprep.subr.mxu0 0.0
    %415 = vmatpush1.msra.mxu0 0.0
    %416 = vmatprep.subr.mxu0 0.0
    %417 = vmatpush1.msra.mxu0 0.0
    %418 = vmatprep.subr.mxu0 0.0
    %419 = vmatpush1.msra.mxu0 0.0
    %420 = vmatprep.subr.mxu0 0.0
    %421 = vmatpush1.msra.mxu0 0.0
    %422 = vmatprep.subr.mxu0 0.0
    %423 = vmatpush1.msra.mxu0 0.0
    %424 = vmatprep.subr.mxu0 0.0
    %425 = vmatpush1.msra.mxu0 0.0
    %426 = vmatprep.subr.mxu0 0.0
    %427 = vmatpush1.msra.mxu0 0.0
    %428 = vmatprep.subr.mxu0 0.0
    %429 = vmatpush1.msra.mxu0 0.0
    %430 = vmatprep.subr.mxu0 0.0
    %431 = vmatpush1.msra.mxu0 0.0
    %432 = vmatprep.subr.mxu0 0.0
    %433 = vmatpush1.msra.mxu0 0.0
    %434 = vmatprep.subr.mxu0 0.0
    %435 = vmatpush1.msra.mxu0 %v184
    %436 = vmatprep.subr.mxu0 0.0
    %437 = vmatpush1.msra.mxu0 %v183
    %438 = vmatprep.subr.mxu0 0.0
    %439 = vmatpush2.msra.mxu0 0.0
    %440 = vmatprep.subr.mxu0 0.0
    %441 = vmatpush2.msra.mxu0 0.0
    %442 = vmatprep.subr.mxu0 0.0
    %443 = vmatpush2.msra.mxu0 0.0
    %444 = vmatprep.subr.mxu0 0.0
    %445 = vmatpush2.msra.mxu0 0.0
    %446 = vmatprep.subr.mxu0 0.0
    %447 = vmatpush2.msra.mxu0 0.0
    %448 = vmatprep.subr.mxu0 0.0
    %449 = vmatpush2.msra.mxu0 0.0
    %450 = vmatprep.subr.mxu0 0.0
    %451 = vmatpush2.msra.mxu0 0.0
    %452 = vmatprep.subr.mxu0 0.0
    %453 = vmatpush2.msra.mxu0 0.0
    %454 = vmatprep.subr.mxu0 0.0
    %455 = vmatpush2.msra.mxu0 0.0
    %456 = vmatprep.subr.mxu0 0.0
    %457 = vmatpush2.msra.mxu0 0.0
    %458 = vmatprep.subr.mxu0 0.0
    %459 = vmatpush2.msra.mxu0 0.0
    %460 = vmatprep.subr.mxu0 0.0
    %461 = vmatpush2.msra.mxu0 0.0
    %462 = vmatprep.subr.mxu0 0.0
    %463 = vmatpush2.msra.mxu0 0.0
    %464 = vmatprep.subr.mxu0 0.0
    %465 = vmatpush2.msra.mxu0 0.0
    %466 = vmatprep.subr.mxu0 0.0
    %467 = vmatpush2.msra.mxu0 0.0
    %468 = vmatprep.subr.mxu0 0.0
    %469 = vmatpush2.msra.mxu0 0.0
    %470 = vmatprep.mubr.f32.mxu0 0.0
    %471 = vmatmul.mubr.f32.gmra.mxu0 %v194
    %v472 = vpop.f32.mrf.mxu0
    %v473 = vadd.f32 %v403, %v472
    %v474 = vpop.f32.mrf.mxu0
    %475 = vdwg.mxu0
    %v476 = vld [vmem:[#allocation7] sm:$0xff]
    %v477 = vld [vmem:[#allocation7 + $0x8] sm:$0xff]
    %v478 = vld [vmem:[#allocation7 + $0x10] sm:$0xff]
    %v479 = vld [vmem:[#allocation7 + $0x18] sm:$0xff]
    %v480 = vld [vmem:[#allocation7 + $0x20] sm:$0xff]
    %v481 = vld [vmem:[#allocation7 + $0x28] sm:$0xff]
    %v482 = vld [vmem:[#allocation7 + $0x30] sm:$0xff]
    %v483 = vld [vmem:[#allocation7 + $0x38] sm:$0xff]
    %v484 = vld [vmem:[#allocation7 + $0x40] sm:$0xff]
    %v485 = vld [vmem:[#allocation7 + $0x48] sm:$0xff]
    %v486 = vld [vmem:[#allocation7 + $0x50] sm:$0xff]
    %v487 = vld [vmem:[#allocation7 + $0x58] sm:$0xff]
    %v488 = vld [vmem:[#allocation7 + $0x60] sm:$0xff]
    %v489 = vld [vmem:[#allocation7 + $0x68] sm:$0xff]
    %v490 = vld [vmem:[#allocation7 + $0x70] sm:$0xff]
    %v491 = vld [vmem:[#allocation7 + $0x78] sm:$0xff]
    %v492 = vld [vmem:[#allocation7 + $0x80] sm:$0xff]
    %v493 = vld [vmem:[#allocation7 + $0x88] sm:$0xff]
    %v494 = vld [vmem:[#allocation7 + $0x90] sm:$0xff]
    %v495 = vld [vmem:[#allocation7 + $0x98] sm:$0xff]
    %v496 = vld [vmem:[#allocation7 + $0xa0] sm:$0xff]
    %v497 = vld [vmem:[#allocation7 + $0xa8] sm:$0xff]
    %v498 = vld [vmem:[#allocation7 + $0xb0] sm:$0xff]
    %v499 = vld [vmem:[#allocation7 + $0xb8] sm:$0xff]
    %v500 = vld [vmem:[#allocation7 + $0xc0] sm:$0xff]
    %v501 = vld [vmem:[#allocation7 + $0xc8] sm:$0xff]
    %v502 = vld [vmem:[#allocation7 + $0xd0] sm:$0xff]
    %v503 = vld [vmem:[#allocation7 + $0xd8] sm:$0xff]
    %v504 = vld [vmem:[#allocation7 + $0xe0] sm:$0xff]
    %v505 = vld [vmem:[#allocation7 + $0xe8] sm:$0xff]
    %v506 = vld [vmem:[#allocation7 + $0xf0] sm:$0xff]
    %v507 = vld [vmem:[#allocation7 + $0xf8] sm:$0xff]
    %v508 = vld [vmem:[%s4] sm:$0x3]
    %v510 = vlaneseq
    %v511 = vshrl.u32 %v510, 7
    %v512 = vsub.s32 0, %v511
    %v513 = vrot.slane %v508, %v512
    %v514 = vlaneseq
    %v515 = vshrl.u32 %v514, 7
    %v516 = vsub.s32 1, %v515
    %v517 = vrot.slane %v508, %v516
    %520 = vmatprep.subr.mxu0 %v507
    %521 = vmatpush1.msra.mxu0 %v506
    %522 = vmatprep.subr.mxu0 %v505
    %523 = vmatpush1.msra.mxu0 %v504
    %524 = vmatprep.subr.mxu0 %v503
    %525 = vmatpush1.msra.mxu0 %v502
    %526 = vmatprep.subr.mxu0 %v501
    %527 = vmatpush1.msra.mxu0 %v500
    %528 = vmatprep.subr.mxu0 %v499
    %529 = vmatpush1.msra.mxu0 %v498
    %530 = vmatprep.subr.mxu0 %v497
    %531 = vmatpush1.msra.mxu0 %v496
    %532 = vmatprep.subr.mxu0 %v495
    %533 = vmatpush1.msra.mxu0 %v494
    %534 = vmatprep.subr.mxu0 %v493
    %535 = vmatpush1.msra.mxu0 %v492
    %536 = vmatprep.subr.mxu0 %v491
    %537 = vmatpush1.msra.mxu0 %v490
    %538 = vmatprep.subr.mxu0 %v489
    %539 = vmatpush1.msra.mxu0 %v488
    %540 = vmatprep.subr.mxu0 %v487
    %541 = vmatpush1.msra.mxu0 %v486
    %542 = vmatprep.subr.mxu0 %v485
    %543 = vmatpush1.msra.mxu0 %v484
    %544 = vmatprep.subr.mxu0 %v483
    %545 = vmatpush1.msra.mxu0 %v482
    %546 = vmatprep.subr.mxu0 %v481
    %547 = vmatpush1.msra.mxu0 %v480
    %548 = vmatprep.subr.mxu0 %v479
    %549 = vmatpush1.msra.mxu0 %v478
    %550 = vmatprep.subr.mxu0 %v477
    %551 = vmatpush1.msra.mxu0 %v476
    %552 = vmatprep.subr.mxu0 0.0
    %553 = vmatpush2.msra.mxu0 0.0
    %554 = vmatprep.subr.mxu0 0.0
    %555 = vmatpush2.msra.mxu0 0.0
    %556 = vmatprep.subr.mxu0 0.0
    %557 = vmatpush2.msra.mxu0 0.0
    %558 = vmatprep.subr.mxu0 0.0
    %559 = vmatpush2.msra.mxu0 0.0
    %560 = vmatprep.subr.mxu0 0.0
    %561 = vmatpush2.msra.mxu0 0.0
    %562 = vmatprep.subr.mxu0 0.0
    %563 = vmatpush2.msra.mxu0 0.0
    %564 = vmatprep.subr.mxu0 0.0
    %565 = vmatpush2.msra.mxu0 0.0
    %566 = vmatprep.subr.mxu0 0.0
    %567 = vmatpush2.msra.mxu0 0.0
    %568 = vmatprep.subr.mxu0 0.0
    %569 = vmatpush2.msra.mxu0 0.0
    %570 = vmatprep.subr.mxu0 0.0
    %571 = vmatpush2.msra.mxu0 0.0
    %572 = vmatprep.subr.mxu0 0.0
    %573 = vmatpush2.msra.mxu0 0.0
    %574 = vmatprep.subr.mxu0 0.0
    %575 = vmatpush2.msra.mxu0 0.0
    %576 = vmatprep.subr.mxu0 0.0
    %577 = vmatpush2.msra.mxu0 0.0
    %578 = vmatprep.subr.mxu0 0.0
    %579 = vmatpush2.msra.mxu0 0.0
    %580 = vmatprep.subr.mxu0 0.0
    %581 = vmatpush2.msra.mxu0 0.0
    %582 = vmatprep.subr.mxu0 0.0
    %583 = vmatpush2.msra.mxu0 0.0
    %584 = vmatprep.mubr.f32.mxu0 0.0
    %585 = vmatmul.mubr.f32.gmra.mxu0 %v473
    %v586 = vpop.f32.mrf.mxu0
    %v587 = vadd.f32 %v513, %v586
    %v588 = vpop.f32.mrf.mxu0
    %v589 = vadd.f32 %v517, %v588
    %590 = vdwg.mxu0
    %v591 = vld [vmem:[#allocation8] sm:$0xff]
    %v592 = vld [vmem:[#allocation8 + $0x8] sm:$0xff]
    %v593 = vld [vmem:[#allocation8 + $0x10] sm:$0xff]
    %v594 = vld [vmem:[#allocation8 + $0x18] sm:$0xff]
    %v595 = vld [vmem:[#allocation8 + $0x20] sm:$0xff]
    %v596 = vld [vmem:[#allocation8 + $0x28] sm:$0xff]
    %v597 = vld [vmem:[#allocation8 + $0x30] sm:$0xff]
    %v598 = vld [vmem:[#allocation8 + $0x38] sm:$0xff]
    %v599 = vld [vmem:[#allocation8 + $0x40] sm:$0xff]
    %v600 = vld [vmem:[#allocation8 + $0x48] sm:$0xff]
    %v601 = vld [vmem:[#allocation8 + $0x50] sm:$0xff]
    %v602 = vld [vmem:[#allocation8 + $0x58] sm:$0xff]
    %v603 = vld [vmem:[#allocation8 + $0x60] sm:$0xff]
    %v604 = vld [vmem:[#allocation8 + $0x68] sm:$0xff]
    %v605 = vld [vmem:[#allocation8 + $0x70] sm:$0xff]
    %v606 = vld [vmem:[#allocation8 + $0x78] sm:$0xff]
    %v607 = vld [vmem:[#allocation8 + $0x80] sm:$0xff]
    %v608 = vld [vmem:[#allocation8 + $0x88] sm:$0xff]
    %v609 = vld [vmem:[#allocation8 + $0x90] sm:$0xff]
    %v610 = vld [vmem:[#allocation8 + $0x98] sm:$0xff]
    %v611 = vld [vmem:[#allocation8 + $0xa0] sm:$0xff]
    %v612 = vld [vmem:[#allocation8 + $0xa8] sm:$0xff]
    %v613 = vld [vmem:[#allocation8 + $0xb0] sm:$0xff]
    %v614 = vld [vmem:[#allocation8 + $0xb8] sm:$0xff]
    %v615 = vld [vmem:[#allocation8 + $0xc0] sm:$0xff]
    %v616 = vld [vmem:[#allocation8 + $0xc8] sm:$0xff]
    %v617 = vld [vmem:[#allocation8 + $0xd0] sm:$0xff]
    %v618 = vld [vmem:[#allocation8 + $0xd8] sm:$0xff]
    %v619 = vld [vmem:[#allocation8 + $0xe0] sm:$0xff]
    %v620 = vld [vmem:[#allocation8 + $0xe8] sm:$0xff]
    %v621 = vld [vmem:[#allocation8 + $0xf0] sm:$0xff]
    %v622 = vld [vmem:[#allocation8 + $0xf8] sm:$0xff]
    %v623 = vld [vmem:[%s6] sm:$0x1]
    %v625 = vlaneseq
    %v626 = vshrl.u32 %v625, 7
    %v627 = vsub.s32 0, %v626
    %v628 = vrot.slane %v623, %v627
    %630 = vmatprep.subr.mxu0 0.0
    %631 = vmatpush1.msra.mxu0 %v606
    %632 = vmatprep.subr.mxu0 0.0
    %633 = vmatpush1.msra.mxu0 %v605
    %634 = vmatprep.subr.mxu0 0.0
    %635 = vmatpush1.msra.mxu0 %v604
    %636 = vmatprep.subr.mxu0 0.0
    %637 = vmatpush1.msra.mxu0 %v603
    %638 = vmatprep.subr.mxu0 0.0
    %639 = vmatpush1.msra.mxu0 %v602
    %640 = vmatprep.subr.mxu0 0.0
    %641 = vmatpush1.msra.mxu0 %v601
    %642 = vmatprep.subr.mxu0 0.0
    %643 = vmatpush1.msra.mxu0 %v600
    %644 = vmatprep.subr.mxu0 0.0
    %645 = vmatpush1.msra.mxu0 %v599
    %646 = vmatprep.subr.mxu0 0.0
    %647 = vmatpush1.msra.mxu0 %v598
    %648 = vmatprep.subr.mxu0 0.0
    %649 = vmatpush1.msra.mxu0 %v597
    %650 = vmatprep.subr.mxu0 0.0
    %651 = vmatpush1.msra.mxu0 %v596
    %652 = vmatprep.subr.mxu0 0.0
    %653 = vmatpush1.msra.mxu0 %v595
    %654 = vmatprep.subr.mxu0 0.0
    %655 = vmatpush1.msra.mxu0 %v594
    %656 = vmatprep.subr.mxu0 0.0
    %657 = vmatpush1.msra.mxu0 %v593
    %658 = vmatprep.subr.mxu0 0.0
    %659 = vmatpush1.msra.mxu0 %v592
    %660 = vmatprep.subr.mxu0 0.0
    %661 = vmatpush1.msra.mxu0 %v591
    %662 = vmatprep.subr.mxu0 0.0
    %663 = vmatpush2.msra.mxu0 %v622
    %664 = vmatprep.subr.mxu0 0.0
    %665 = vmatpush2.msra.mxu0 %v621
    %666 = vmatprep.subr.mxu0 0.0
    %667 = vmatpush2.msra.mxu0 %v620
    %668 = vmatprep.subr.mxu0 0.0
    %669 = vmatpush2.msra.mxu0 %v619
    %670 = vmatprep.subr.mxu0 0.0
    %671 = vmatpush2.msra.mxu0 %v618
    %672 = vmatprep.subr.mxu0 0.0
    %673 = vmatpush2.msra.mxu0 %v617
    %674 = vmatprep.subr.mxu0 0.0
    %675 = vmatpush2.msra.mxu0 %v616
    %676 = vmatprep.subr.mxu0 0.0
    %677 = vmatpush2.msra.mxu0 %v615
    %678 = vmatprep.subr.mxu0 0.0
    %679 = vmatpush2.msra.mxu0 %v614
    %680 = vmatprep.subr.mxu0 0.0
    %681 = vmatpush2.msra.mxu0 %v613
    %682 = vmatprep.subr.mxu0 0.0
    %683 = vmatpush2.msra.mxu0 %v612
    %684 = vmatprep.subr.mxu0 0.0
    %685 = vmatpush2.msra.mxu0 %v611
    %686 = vmatprep.subr.mxu0 0.0
    %687 = vmatpush2.msra.mxu0 %v610
    %688 = vmatprep.subr.mxu0 0.0
    %689 = vmatpush2.msra.mxu0 %v609
    %690 = vmatprep.subr.mxu0 0.0
    %691 = vmatpush2.msra.mxu0 %v608
    %692 = vmatprep.subr.mxu0 0.0
    %693 = vmatpush2.msra.mxu0 %v607
    %694 = vmatprep.mubr.f32.mxu0 %v589
    %695 = vmatmul.mubr.f32.gmra.mxu0 %v587
    %v696 = vpop.f32.mrf.mxu0
    %v697 = vadd.f32 %v628, %v696
    %v698 = vpop.f32.mrf.mxu0
    %699 = vdwg.mxu0
    %700 = vst [vmem:[#allocation10] sm:$0xff] %v697
    // Predicated region
    $region46: #{tpu_custom_call.1} parent=1 // pred_check
      _
    $region47: #{tpu_custom_call.1} parent=1 // pred_check_branch
      %702 = sbr.rel (0) target = $region49
    $region48: #{tpu_custom_call.1} parent=1 // pred_region
      %s704 = ssub.s32 128, 128
      %705 = vsyncadd [#allocation4], %s704
      %s707 = sshll.u32 [#allocation10], 4
      %s708 = int_to_ptr.vmem [resolvable:$true] %s707
      %710 = dma.vmem_to_hbm [thread:$0]  %s708, 128, %s7, [#allocation4]
    $region49: #{tpu_custom_call.1} parent=1 // pred_fallthru
      _
    // Predicated region
    $region50: #{tpu_custom_call.1} parent=1 // pred_check
      _
    $region51: #{tpu_custom_call.1} parent=1 // pred_check_branch
      %712 = sbr.rel (0) target = $region53
    $region52: #{tpu_custom_call.1} parent=1 // pred_region
      %713 = dma.done [#allocation4], 128
    $region53: #{tpu_custom_call.1} parent=1 // pred_fallthru
      _
    %714 = vsyncpa [#allocation3], 1
    %715 = vsyncpa [#allocation6], 1
    %716 = vsyncpa [#allocation9], 1
    %717 = vsyncpa [#allocation4], 1

</llo_original>
